<compile_context>
chip_gen: v7x
topology: tpu7x:2x2x1
jax: 0.10.0
libtpu: 0.0.40
codegen_flags: <defaults>
</compile_context>

<pallas_src>
import math

import jax
import jax.numpy as jnp
from jax.experimental import pallas as pl
from jax.experimental.pallas import tpu as pltpu


# ------------------------------ tiling policy --------------------------------

_VMEM_BUDGET = 40 * 1024 * 1024   # tile-selection budget (safe on v7x 64 MiB)
_VMEM_LIMIT = 48 * 1024 * 1024    # scoped VMEM limit handed to the compiler


def _round_up(v, m):
    return (v + m - 1) // m * m


def _fused_vmem_bytes(tm, kb, tn, x_item, w_item):
    # Double-buffered x / w / bias input tiles + double-buffered f32 output tile.
    return (2 * tm * kb * x_item
            + 2 * kb * tn * w_item
            + 2 * tn * 4
            + 2 * tm * tn * 4)


def _split_for_megacore(M, tm, Np, tn):
    """v7x has 2 TensorCores: make sure a 'parallel' grid axis has >=2 iters
    when the problem is large enough to split (neutral on v5e/v6e)."""
    if Np // tn >= 2:
        return tm, tn
    while pl.cdiv(M, tm) < 2 and tm >= 16 and M > tm // 2:
        tm = _round_up(tm // 2, 8)
    return tm, tn


def _choose_tiles(M, K, Np, x_item, w_item, max_k_block=None):
    """Returns (tm, tn, tk); tk is None when K is collapsed into one block."""
    # Lane-dense N tile: largest of 512/256/128 dividing Np (Np % 128 == 0).
    tn = 128
    for cand in (512, 256):
        if Np % cand == 0:
            tn = cand
            break

    tm_cap = _round_up(M, 8)                      # avoid over-padding small M
    tm_cands = [min(t, tm_cap) for t in (1024, 512, 256, 128, 64, 32, 16, 8)]

    # Preferred path: whole K in one block -> 2-D grid, no accumulator.
    if max_k_block is None or K <= max_k_block:
        for tm in tm_cands:
            if _fused_vmem_bytes(tm, K, tn, x_item, w_item) <= _VMEM_BUDGET:
                tm, tn = _split_for_megacore(M, tm, Np, tn)
                return tm, tn, None

    # Fallback for very large num_feature: split the reduction axis.
    tk_cands = (4096, 2048, 1024, 512, 256, 128)
    if max_k_block is not None:
        tk_cands = tuple(t for t in tk_cands if t <= max_k_block) or (128,)
    for tk in tk_cands:
        for tm in tm_cands:
            if _fused_vmem_bytes(tm, tk, tn, x_item, w_item) <= _VMEM_BUDGET:
                tm, tn = _split_for_megacore(M, tm, Np, tn)
                return tm, tn, tk
    return 8, tn, 128


# ------------------------------ Pallas kernels --------------------------------

def _linear_kernel_fused(x_ref, w_ref, b_ref, o_ref):
    """Whole-K fused: y_tile = x_tile @ w_tile + bias. Grid = (M tiles, N tiles)."""
    lhs = x_ref[...].astype(w_ref.dtype)          # no-op for f32 weights
    o_ref[...] = (jnp.dot(lhs, w_ref[...], preferred_element_type=jnp.float32)
                  + b_ref[...]).astype(o_ref.dtype)


def _linear_kernel_ksplit(x_ref, w_ref, b_ref, o_ref):
    """Large-K fallback. Grid = (M tiles, N tiles, K tiles); K innermost.
    Accumulates directly into the resident f32 output block (no scratch);
    bias is added exactly once, on the first K step."""
    k = pl.program_id(2)
    lhs = x_ref[...].astype(w_ref.dtype)
    part = jnp.dot(lhs, w_ref[...], preferred_element_type=jnp.float32)

    @pl.when(k == 0)
    def _():
        o_ref[...] = part + b_ref[...]

    @pl.when(k != 0)
    def _():
        o_ref[...] += part


# ------------------------------ parameter setup -------------------------------

def init_full_layer(key, num_feature, num_classes):
    """Matches torch.nn.Linear default init: U(-1/sqrt(in), 1/sqrt(in))."""
    kw, kb = jax.random.split(key)
    bound = 1.0 / math.sqrt(num_feature)
    weight = jax.random.uniform(
        kw, (num_classes, num_feature), jnp.float32, -bound, bound)
    bias = jax.random.uniform(
        kb, (num_classes,), jnp.float32, -bound, bound)
    return weight, bias


def prepare_fc_params(weight, bias, operand_dtype=jnp.float32):
    """Hoisted out of the per-call path: transpose to (K, Np), pad the class
    axis to a multiple of 128 (lane-dense stores), optional bf16 operand cast.
    Bias stays f32 and is laid out as a (1, Np) row for a single VMEM tile."""
    N, K = weight.shape
    Np = _round_up(N, 128)
    w_kn = jnp.zeros((K, Np), operand_dtype).at[:, :N].set(
        weight.T.astype(operand_dtype))
    b_n = jnp.zeros((1, Np), jnp.float32).at[:, :N].set(
        bias.astype(jnp.float32))
    return dict(w_kn=w_kn, b_n=b_n, num_classes=N)


# --------------------------------- forward ------------------------------------

def full_layer_forward(x, params, *, max_k_block=None):
    """Full_layer.forward: y = x @ W^T + b (PyTorch nn.Linear semantics)."""
    w = params["w_kn"]            # (K, Np), prepared once at init
    b = params["b_n"]             # (1, Np) f32
    n_classes = params["num_classes"]

    lead = x.shape[:-1]
    K = x.shape[-1]
    Np = w.shape[1]
    x2 = x.reshape(-1, K)
    M = x2.shape[0]

    tm, tn, tk = _choose_tiles(M, K, Np, x2.dtype.itemsize, w.dtype.itemsize,
                               max_k_block)

    cp = pltpu.CompilerParams(
        dimension_semantics=(("parallel", "parallel") if tk is None
                             else ("parallel", "parallel", "arbitrary")),
        vmem_limit_bytes=_VMEM_LIMIT)

    if tk is None:
        # Typical classifier-head case: K collapsed into one block.
        grid = (pl.cdiv(M, tm), Np // tn)
        out = pl.pallas_call(
            _linear_kernel_fused,
            out_shape=jax.ShapeDtypeStruct((M, Np), jnp.float32),
            grid_spec=pltpu.PrefetchScalarGridSpec(
                num_scalar_prefetch=0,
                grid=grid,
                in_specs=[
                    pl.BlockSpec((tm, K), lambda i, j: (i, 0)),   # x rows
                    pl.BlockSpec((K, tn), lambda i, j: (0, j)),   # W^T cols
                    pl.BlockSpec((1, tn), lambda i, j: (0, j)),   # bias
                ],
                out_specs=pl.BlockSpec((tm, tn), lambda i, j: (i, j)),
            ),
            compiler_params=cp,
        )(x2, w, b)
    else:
        # Very large num_feature: split K (zero-padding K is exact for Linear).
        Kp = _round_up(K, tk)
        xp = x2 if Kp == K else jnp.pad(x2, ((0, 0), (0, Kp - K)))
        wp = w if Kp == K else jnp.pad(w, ((0, Kp - K), (0, 0)))
        grid = (pl.cdiv(M, tm), Np // tn, Kp // tk)
        out = pl.pallas_call(
            _linear_kernel_ksplit,
            out_shape=jax.ShapeDtypeStruct((M, Np), jnp.float32),
            grid_spec=pltpu.PrefetchScalarGridSpec(
                num_scalar_prefetch=0,
                grid=grid,
                in_specs=[
                    pl.BlockSpec((tm, tk), lambda i, j, k: (i, k)),
                    pl.BlockSpec((tk, tn), lambda i, j, k: (k, j)),
                    pl.BlockSpec((1, tn), lambda i, j, k: (0, j)),
                ],
                out_specs=pl.BlockSpec((tm, tn), lambda i, j, k: (i, j)),
            ),
            compiler_params=cp,
        )(xp, wp, b)

    if n_classes != Np:
        out = out[:, :n_classes]
    return out.reshape(*lead, n_classes)


# ----------------------------------- main --------------------------------------

if __name__ == "__main__":
    key = jax.random.PRNGKey(0)
    k_param, k_input, k_big = jax.random.split(key, 3)

    # Shapes implied by Full_layer usage: small batch, feature vector, classes.
    batch, num_feature, num_classes = 2, 64, 10
    weight, bias = init_full_layer(k_param, num_feature, num_classes)
    params = prepare_fc_params(weight, bias)               # f32 operands
    x = jax.random.normal(k_input, (batch, num_feature), jnp.float32)

    out = jax.block_until_ready(full_layer_forward(x, params))
    ref = x @ weight.T + bias
    assert out.shape == (batch, num_classes), out.shape
    assert bool(jnp.all(jnp.isfinite(out)))
    assert bool(jnp.allclose(out, ref, rtol=1e-4, atol=1e-4)), "fused path mismatch"

    # Exercise the K-split fallback path + padded-N slicing (still small shapes).
    bigM, bigK, bigN = 32, 384, 300
    w2, b2 = init_full_layer(k_big, bigK, bigN)
    p2 = prepare_fc_params(w2, b2)
    xb = jax.random.normal(k_input, (bigM, bigK), jnp.float32)
    out2 = jax.block_until_ready(full_layer_forward(xb, p2, max_k_block=128))
    ref2 = xb @ w2.T + b2
    assert out2.shape == (bigM, bigN), out2.shape
    assert bool(jnp.allclose(out2, ref2, rtol=1e-3, atol=1e-3)), "k-split path mismatch"

    # Optional bf16-operand variant (numerics-conditional; f32 accumulation).
    p_bf16 = prepare_fc_params(weight, bias, operand_dtype=jnp.bfloat16)
    out_bf = jax.block_until_ready(full_layer_forward(x, p_bf16))
    assert bool(jnp.allclose(out_bf, ref, rtol=2e-2, atol=2e-2)), "bf16 path mismatch"

    print("KERNEL_OK")
</pallas_src>

<mosaic_0001>
module attributes {stable_mosaic.version = 11 : i64} {
  func.func @_linear_kernel_fused(%arg0: i32, %arg1: i32, %arg2: memref<8x64xf32, #tpu.memory_space<vmem>>, %arg3: memref<64x128xf32, #tpu.memory_space<vmem>>, %arg4: memref<1x128xf32, #tpu.memory_space<vmem>>, %arg5: memref<8x128xf32, #tpu.memory_space<vmem>>) attributes {dimension_semantics = [#tpu.dimension_semantics<parallel>, #tpu.dimension_semantics<parallel>], iteration_bounds = array<i64: 1, 1>, scalar_prefetch = 0 : i64, scratch_operands = 0 : i64, tpu.core_type = #tpu.core_type<tc>, window_params = [{transform_indices = @transform_0, window_bounds = array<i64: 8, 64>}, {transform_indices = @transform_1, window_bounds = array<i64: 64, 128>}, {transform_indices = @transform_2, window_bounds = array<i64: 1, 128>}, {transform_indices = @transform_3, window_bounds = array<i64: 8, 128>}]} {
    %c0 = arith.constant 0 : index
    %c0_0 = arith.constant 0 : index
    %0 = vector.load %arg2[%c0, %c0_0] : memref<8x64xf32, #tpu.memory_space<vmem>>, vector<8x64xf32>
    %c0_1 = arith.constant 0 : index
    %c0_2 = arith.constant 0 : index
    %1 = vector.load %arg3[%c0_1, %c0_2] : memref<64x128xf32, #tpu.memory_space<vmem>>, vector<64x128xf32>
    %cst = arith.constant dense<0.000000e+00> : vector<8x128xf32>
    %2 = tpu.matmul %0, %1, %cst {dimension_numbers = #tpu.dot_dimension_numbers<[1], [0], [0], [1], [0, 0, 1, 1], [], []>} : vector<8x64xf32>, vector<64x128xf32>, vector<8x128xf32> -> vector<8x128xf32>
    %c0_3 = arith.constant 0 : index
    %c0_4 = arith.constant 0 : index
    %3 = vector.load %arg4[%c0_3, %c0_4] : memref<1x128xf32, #tpu.memory_space<vmem>>, vector<1x128xf32>
    %4 = vector.broadcast %3 : vector<1x128xf32> to vector<8x128xf32>
    %5 = arith.addf %2, %4 : vector<8x128xf32>
    %c0_5 = arith.constant 0 : index
    %c0_6 = arith.constant 0 : index
    %6 = vector.load %arg5[%c0_5, %c0_6] : memref<8x128xf32, #tpu.memory_space<vmem>>, vector<8x128xf32>
    tpu.vector_store %arg5[%c0_5, %c0_6], %5 {strides = array<i32>} : memref<8x128xf32, #tpu.memory_space<vmem>>, vector<8x128xf32>,
    return
  }
  func.func @transform_0(%arg0: i32, %arg1: i32) -> (i32, i32) {
    %c0_i32 = arith.constant 0 : i32
    %c0_i32_0 = arith.constant 0 : i32
    return %arg0, %c0_i32 : i32, i32
  }
  func.func @transform_1(%arg0: i32, %arg1: i32) -> (i32, i32) {
    %c0_i32 = arith.constant 0 : i32
    %c0_i32_0 = arith.constant 0 : i32
    return %c0_i32, %arg1 : i32, i32
  }
  func.func @transform_2(%arg0: i32, %arg1: i32) -> (i32, i32) {
    %c0_i32 = arith.constant 0 : i32
    %c0_i32_0 = arith.constant 0 : i32
    return %c0_i32, %arg1 : i32, i32
  }
  func.func @transform_3(%arg0: i32, %arg1: i32) -> (i32, i32) {
    %c0_i32 = arith.constant 0 : i32
    return %arg0, %arg1 : i32, i32
  }
}

</mosaic_0001>

<llo_original>
// kernel: tpu_custom_call.1
$region0: #{tpu_custom_call.1}
  #allocation0 [shape = 'u32[]', space=smem, size = 0x4, offset = 0x4, fixed_abs, tag = 'smem constant byte address 0x4 - core index']
  #allocation1 [shape = 'u32[144,128]{1,0:T(1,128)}', space=vmem, size = 0x12000, scoped, tag = 'internal scratch']
  %s0 = inlined_call_operand.hbm [shape: f32[2,64], index: 0, kind: input, shape index: {}]
  %s1 = inlined_call_operand.hbm [shape: f32[64,128], index: 1, kind: input, shape index: {}]
  %s2 = inlined_call_operand.vmem [shape: f32[1,128], index: 2, kind: input, shape index: {}]
  %s3 = inlined_call_operand.hbm [shape: f32[2,128], index: 3, kind: output, shape index: {}]
  %s4 = sld [smem:[#allocation0]]
  $region30: #{tpu_custom_call.1} parent=0
    _
  %s6 = ssub.s32 1, %s4
  %s7 = scalar_select 0, %s6, %s4
  $region1: #{tpu_custom_call.1} parent=0
    #allocation2 [shape = 'u8[4096]{0}', space=vmem, size = 0x1000, scoped, tag = 'input window, operand 0, single buffered']
    #allocation3 [shape = 's32[1]{0}', space=sflag, size = 0x4, scoped, tag = 'scoped memory for tpu_custom_call.1']
    #allocation4 [shape = 's32[1]{0}', space=sflag, size = 0x4, scoped, tag = 'scoped memory for tpu_custom_call.1']
    #allocation5 [shape = 'u8[32768]{0}', space=vmem, size = 0x8000, scoped, tag = 'input window, operand 1, single buffered']
    #allocation6 [shape = 's32[1]{0}', space=sflag, size = 0x4, scoped, tag = 'scoped memory for tpu_custom_call.1']
    #allocation7 [shape = 'u8[4096]{0}', space=vmem, size = 0x1000, scoped, tag = 'output window, operand 0, single buffered']
    %8 = vsyncpa [#allocation3], 0
    %9 = vsyncpa [#allocation6], 0
    %10 = vsyncpa [#allocation4], 0
    // Predicated region
    $region2: #{tpu_custom_call.1} parent=1 // pred_check
      _
    $region3: #{tpu_custom_call.1} parent=1 // pred_check_branch
      %12 = sbr.rel (0) target = $region5
    $region4: #{tpu_custom_call.1} parent=1 // pred_region
      %s14 = ssub.s32 128, 32
      %15 = vsyncadd [#allocation3], %s14
      %s16 = sshll.u32 [#allocation2], 4
      %s17 = int_to_ptr.vmem [resolvable:$true] %s16
      %22 = dma.hbm_to_vmem [thread:$0]  %s0, 32, %s17, [#allocation3], 32, 32, 2
    $region5: #{tpu_custom_call.1} parent=1 // pred_fallthru
      _
    // Predicated region
    $region6: #{tpu_custom_call.1} parent=1 // pred_check
      _
    $region7: #{tpu_custom_call.1} parent=1 // pred_check_branch
      %24 = sbr.rel (0) target = $region9
    $region8: #{tpu_custom_call.1} parent=1 // pred_region
      %s26 = ssub.s32 1024, 1024
      %27 = vsyncadd [#allocation6], %s26
      %s28 = sshll.u32 [#allocation5], 4
      %s29 = int_to_ptr.vmem [resolvable:$true] %s28
      %34 = dma.hbm_to_vmem [thread:$0]  %s1, 1024, %s29, [#allocation6], 128, 128, 8
    $region9: #{tpu_custom_call.1} parent=1 // pred_fallthru
      _
    // Predicated region
    $region10: #{tpu_custom_call.1} parent=1 // pred_check
      _
    $region11: #{tpu_custom_call.1} parent=1 // pred_check_branch
      %36 = sbr.rel (0) target = $region13
    $region12: #{tpu_custom_call.1} parent=1 // pred_region
      _
    $region13: #{tpu_custom_call.1} parent=1 // pred_fallthru
      _
    // Predicated region
    $region14: #{tpu_custom_call.1} parent=1 // pred_check
      _
    $region15: #{tpu_custom_call.1} parent=1 // pred_check_branch
      %38 = sbr.rel (0) target = $region17
    $region16: #{tpu_custom_call.1} parent=1 // pred_region
      %39 = dma.done [#allocation3], 128
    $region17: #{tpu_custom_call.1} parent=1 // pred_fallthru
      _
    // Predicated region
    $region18: #{tpu_custom_call.1} parent=1 // pred_check
      _
    $region19: #{tpu_custom_call.1} parent=1 // pred_check_branch
      %41 = sbr.rel (0) target = $region21
    $region20: #{tpu_custom_call.1} parent=1 // pred_region
      %42 = dma.done [#allocation6], 1024
    $region21: #{tpu_custom_call.1} parent=1 // pred_fallthru
      _
    %v43 = vld [vmem:[#allocation2] sm:$0xff]
    %v44 = vld [vmem:[#allocation5] sm:$0xff]
    %v45 = vld [vmem:[#allocation5 + $0x8] sm:$0xff]
    %v46 = vld [vmem:[#allocation5 + $0x10] sm:$0xff]
    %v47 = vld [vmem:[#allocation5 + $0x18] sm:$0xff]
    %v48 = vld [vmem:[#allocation5 + $0x20] sm:$0xff]
    %v49 = vld [vmem:[#allocation5 + $0x28] sm:$0xff]
    %v50 = vld [vmem:[#allocation5 + $0x30] sm:$0xff]
    %v51 = vld [vmem:[#allocation5 + $0x38] sm:$0xff]
    %v52 = vld [vmem:[%s2] sm:$0x1]
    %v54 = vlaneseq
    %v55 = vshrl.u32 %v54, 7
    %v56 = vsub.s32 0, %v55
    %v57 = vrot.slane %v52, %v56
    %vm59 = vcmask 523264
    %v61 = vsel %vm59, %v43, 0
    %63 = vmatprep.subr.mxu0 0.0
    %64 = vmatpush1.msra.mxu0 %v44
    %65 = vmatprep.subr.mxu0 0.0
    %66 = vmatpush1.msra.mxu0 %v45
    %67 = vmatprep.subr.mxu0 0.0
    %68 = vmatpush1.msra.mxu0 %v46
    %69 = vmatprep.subr.mxu0 0.0
    %70 = vmatpush1.msra.mxu0 %v47
    %71 = vmatprep.subr.mxu0 0.0
    %72 = vmatpush1.msra.mxu0 %v48
    %73 = vmatprep.subr.mxu0 0.0
    %74 = vmatpush1.msra.mxu0 %v49
    %75 = vmatprep.subr.mxu0 0.0
    %76 = vmatpush1.msra.mxu0 %v50
    %77 = vmatprep.subr.mxu0 0.0
    %78 = vmatpush1.msra.mxu0 %v51
    %79 = vmatprep.subr.mxu0 0.0
    %80 = vmatpush1.msra.mxu0 0.0
    %81 = vmatprep.subr.mxu0 0.0
    %82 = vmatpush1.msra.mxu0 0.0
    %83 = vmatprep.subr.mxu0 0.0
    %84 = vmatpush1.msra.mxu0 0.0
    %85 = vmatprep.subr.mxu0 0.0
    %86 = vmatpush1.msra.mxu0 0.0
    %87 = vmatprep.subr.mxu0 0.0
    %88 = vmatpush1.msra.mxu0 0.0
    %89 = vmatprep.subr.mxu0 0.0
    %90 = vmatpush1.msra.mxu0 0.0
    %91 = vmatprep.subr.mxu0 0.0
    %92 = vmatpush1.msra.mxu0 0.0
    %93 = vmatprep.subr.mxu0 0.0
    %94 = vmatpush1.msra.mxu0 0.0
    %95 = vmatprep.subr.mxu0 0.0
    %96 = vmatpush1.msra.mxu0 0.0
    %97 = vmatprep.subr.mxu0 0.0
    %98 = vmatpush1.msra.mxu0 0.0
    %99 = vmatprep.subr.mxu0 0.0
    %100 = vmatpush1.msra.mxu0 0.0
    %101 = vmatprep.subr.mxu0 0.0
    %102 = vmatpush1.msra.mxu0 0.0
    %103 = vmatprep.subr.mxu0 0.0
    %104 = vmatpush1.msra.mxu0 0.0
    %105 = vmatprep.subr.mxu0 0.0
    %106 = vmatpush1.msra.mxu0 0.0
    %107 = vmatprep.subr.mxu0 0.0
    %108 = vmatpush1.msra.mxu0 0.0
    %109 = vmatprep.subr.mxu0 0.0
    %110 = vmatpush1.msra.mxu0 0.0
    %111 = vmatprep.subr.mxu0 0.0
    %112 = vmatpush1.msra.mxu0 0.0
    %113 = vmatprep.subr.mxu0 0.0
    %114 = vmatpush1.msra.mxu0 0.0
    %115 = vmatprep.subr.mxu0 0.0
    %116 = vmatpush1.msra.mxu0 0.0
    %117 = vmatprep.subr.mxu0 0.0
    %118 = vmatpush1.msra.mxu0 0.0
    %119 = vmatprep.subr.mxu0 0.0
    %120 = vmatpush1.msra.mxu0 0.0
    %121 = vmatprep.subr.mxu0 0.0
    %122 = vmatpush1.msra.mxu0 0.0
    %123 = vmatprep.subr.mxu0 0.0
    %124 = vmatpush1.msra.mxu0 0.0
    %125 = vmatprep.subr.mxu0 0.0
    %126 = vmatpush1.msra.mxu0 0.0
    %127 = vmatprep.mubr.f32.mxu0 0.0
    %128 = vmatmul.mubr.f32.gmra.mrb[0].mxu0 %v61
    %v129 = vpop.f32.mrb[0].mxu0
    %v130 = vadd.f32 %v57, %v129
    %v131 = vpop.f32.mrb[0].mxu0
    %132 = vdwg.mxu0
    %133 = vst [vmem:[#allocation7] sm:$0xff] %v130
    // Predicated region
    $region22: #{tpu_custom_call.1} parent=1 // pred_check
      _
    $region23: #{tpu_custom_call.1} parent=1 // pred_check_branch
      %135 = sbr.rel (0) target = $region25
    $region24: #{tpu_custom_call.1} parent=1 // pred_region
      %s137 = ssub.s32 128, 32
      %138 = vsyncadd [#allocation4], %s137
      %s139 = sshll.u32 [#allocation7], 4
      %s140 = int_to_ptr.vmem [resolvable:$true] %s139
      %145 = dma.vmem_to_hbm [thread:$0]  %s140, 32, %s3, [#allocation4], 32, 32, 2
    $region25: #{tpu_custom_call.1} parent=1 // pred_fallthru
      _
    // Predicated region
    $region26: #{tpu_custom_call.1} parent=1 // pred_check
      _
    $region27: #{tpu_custom_call.1} parent=1 // pred_check_branch
      %147 = sbr.rel (0) target = $region29
    $region28: #{tpu_custom_call.1} parent=1 // pred_region
      %148 = dma.done [#allocation4], 128
    $region29: #{tpu_custom_call.1} parent=1 // pred_fallthru
      _
    %149 = vsyncpa [#allocation3], 1
    %150 = vsyncpa [#allocation6], 1
    %151 = vsyncpa [#allocation4], 1

</llo_original>
